<compile_context>
chip_gen: v7x
topology: tpu7x:2x2x1
jax: 0.10.0
libtpu: 0.0.40
codegen_flags: <defaults>
</compile_context>

<pallas_src>
import math

import jax
import jax.numpy as jnp
import numpy as np
from jax.experimental import pallas as pl
from jax.experimental.pallas import tpu as pltpu

D_MODEL = 32
NUM_HEADS = 4
HEAD_DIM = D_MODEL // NUM_HEADS
BATCH = 2
SEQ = 8
N_TOK = BATCH * SEQ                     # 16 rows after batch-fold

# Parameter-slab layout (rows x 128 lanes, f32):
#   rows [0:32)   cols [0:96)    -> wqkv  (D, 3D)   (wq pre-scaled by 1/sqrt(hd))
#   row  32       cols [0:96)    -> bqkv  (1, 3D)   (bq pre-scaled)
#   rows [0:32)   cols [96:128)  -> wo    (D, D)
#   row  32       cols [96:128)  -> bo    (1, D)
#   rows [40:56)  cols [0:16)    -> additive block-diagonal mask bias (N, N)
MASK_ROW = 40                           # sublane-aligned start of the mask block
PARAM_ROWS = MASK_ROW + N_TOK           # 56
PARAM_COLS = 4 * D_MODEL                # 128 (lane-dense)


def mhsa_kernel(x_ref, p_ref, o_ref):
    N, D = x_ref.shape                  # (16, 32)
    H = NUM_HEADS
    hd = D // H

    # --- static slab slices (no extra DMAs, just VMEM views/loads) ---------
    wqkv = p_ref[0:D, 0:3 * D]                       # (32, 96)
    bqkv = p_ref[D:D + 1, 0:3 * D]                   # (1, 96)
    wo = p_ref[0:D, 3 * D:4 * D]                     # (32, 32)
    bo = p_ref[D:D + 1, 3 * D:4 * D]                 # (1, 32)
    bias = p_ref[MASK_ROW:MASK_ROW + N, 0:N]         # (16, 16) additive mask

    x2 = x_ref[...]                                  # (16, 32)

    # Fused QKV projection: single lane-dense MXU matmul + one bias add.
    qkv = jnp.dot(x2, wqkv, preferred_element_type=jnp.float32) + bqkv   # (16, 96)

    q_all = qkv[:, 0:D]                              # (16, 32), head-major lanes
    k_all = qkv[:, D:2 * D]
    v_all = qkv[:, 2 * D:3 * D]

    # Per-head views (static lane slices stacked along a major head axis).
    q = jnp.stack([q_all[:, h * hd:(h + 1) * hd] for h in range(H)], axis=0)  # (H,N,hd)
    k = jnp.stack([k_all[:, h * hd:(h + 1) * hd] for h in range(H)], axis=0)
    v = jnp.stack([v_all[:, h * hd:(h + 1) * hd] for h in range(H)], axis=0)

    # Head-batched scores; contraction on hd -> no materialized k^T.
    # (scale already folded into wq/bq at pack time)
    scores = jnp.einsum("hqd,hkd->hqk", q, k,
                        preferred_element_type=jnp.float32)               # (H,N,N)
    scores = scores + bias[None, :, :]               # block-diagonal batch mask

    # Softmax (max-subtracted); EUP reciprocal for the denominator.
    scores = scores - jnp.max(scores, axis=-1, keepdims=True)
    p = jnp.exp(scores)
    p = p * pl.reciprocal(jnp.sum(p, axis=-1, keepdims=True), approx=True)

    ctx = jnp.einsum("hqk,hkd->hqd", p, v,
                     preferred_element_type=jnp.float32)                  # (H,N,hd)

    # Assemble heads into the lane dim, then ONE (16,32)@(32,32) output proj.
    ctx2 = jnp.concatenate([ctx[h] for h in range(H)], axis=-1)           # (16, 32)
    out = jnp.dot(ctx2, wo, preferred_element_type=jnp.float32) + bo      # (16, 32)

    # TODO(synk): output last dim is 32 (<128 lanes) -> masked store; lane-dense
    # repacking was judged not worth the relayout at this size.
    o_ref[...] = out.astype(o_ref.dtype)


def multihead_self_attention(x, param_slab):
    """x: (B, S, D) f32. param_slab: (56, 128) f32 from pack_params()."""
    B, S, D = x.shape
    x2 = x.reshape(B * S, D)            # wrapper-side reshape (free XLA metadata)
    out2 = pl.pallas_call(
        mhsa_kernel,
        out_shape=jax.ShapeDtypeStruct((B * S, D), x.dtype),
        in_specs=[pl.BlockSpec(memory_space=pltpu.MemorySpace.VMEM),
                  pl.BlockSpec(memory_space=pltpu.MemorySpace.VMEM)],
        out_specs=pl.BlockSpec(memory_space=pltpu.MemorySpace.VMEM),
    )(x2, param_slab)
    return out2.reshape(B, S, D)


def init_params(key, d_model):
    """Deterministic init mimicking torch.nn.Linear (uniform +/- 1/sqrt(fan_in)).
    Weights stored already transposed to (in, out) so math is x @ W + b."""
    bound = 1.0 / math.sqrt(d_model)
    names = ["wq", "bq", "wk", "bk", "wv", "bv", "wo", "bo"]
    keys = jax.random.split(key, len(names))
    params = {}
    for name, k in zip(names, keys):
        shape = (d_model, d_model) if name.startswith("w") else (1, d_model)
        params[name] = jax.random.uniform(
            k, shape, minval=-bound, maxval=bound, dtype=jnp.float32)
    return params


def pack_params(params, d_model=D_MODEL, num_heads=NUM_HEADS,
                batch=BATCH, seq=SEQ):
    """Pack the 8 Linear params + the block-diagonal mask bias into one
    lane-dense (56, 128) f32 slab. The 1/sqrt(head_dim) scale is folded into
    wq/bq here."""
    hd = d_model // num_heads
    scale = 1.0 / math.sqrt(hd)

    wqkv = jnp.concatenate(
        [params["wq"] * scale, params["wk"], params["wv"]], axis=-1)      # (D, 3D)
    bqkv = jnp.concatenate(
        [params["bq"] * scale, params["bk"], params["bv"]], axis=-1)      # (1, 3D)

    n = batch * seq
    row_b = np.arange(n)[:, None] // seq
    col_b = np.arange(n)[None, :] // seq
    mask_bias = np.where(row_b == col_b, 0.0, -1e30).astype(np.float32)   # (N, N)

    slab = jnp.zeros((PARAM_ROWS, PARAM_COLS), jnp.float32)
    slab = slab.at[0:d_model, 0:3 * d_model].set(wqkv)
    slab = slab.at[d_model:d_model + 1, 0:3 * d_model].set(bqkv)
    slab = slab.at[0:d_model, 3 * d_model:4 * d_model].set(params["wo"])
    slab = slab.at[d_model:d_model + 1, 3 * d_model:4 * d_model].set(params["bo"])
    slab = slab.at[MASK_ROW:MASK_ROW + n, 0:n].set(jnp.asarray(mask_bias))
    return slab


def reference_mhsa(x, params):
    """Pure-JAX reference matching the PyTorch forward exactly (mask=None)."""
    B, S, D = x.shape
    q = x @ params["wq"] + params["bq"][0]
    k = x @ params["wk"] + params["bk"][0]
    v = x @ params["wv"] + params["bv"][0]

    def split(t):
        return t.reshape(B, S, NUM_HEADS, HEAD_DIM).transpose(0, 2, 1, 3)

    q, k, v = split(q), split(k), split(v)
    scores = jnp.einsum("bhqd,bhkd->bhqk", q, k) / jnp.sqrt(jnp.float32(HEAD_DIM))
    attn = jax.nn.softmax(scores, axis=-1)
    ctx = jnp.einsum("bhqk,bhkd->bhqd", attn, v)
    ctx = ctx.transpose(0, 2, 1, 3).reshape(B, S, D)
    return ctx @ params["wo"] + params["bo"][0]


if __name__ == "__main__":
    # TODO(synk): the optional user-supplied `mask` argument of the PyTorch
    # forward is not implemented (the module is exercised with mask=None).
    key = jax.random.PRNGKey(0)
    k_x, k_p = jax.random.split(key)
    x = jax.random.normal(k_x, (BATCH, SEQ, D_MODEL), dtype=jnp.float32)
    params = init_params(k_p, D_MODEL)
    slab = pack_params(params)

    out = multihead_self_attention(x, slab)
    out = jax.block_until_ready(out)

    ref = reference_mhsa(x, params)
    # Slightly relaxed tolerance to accommodate the approx (EUP) reciprocal in
    # the softmax denominator; still far tighter than any real math error.
    np.testing.assert_allclose(np.asarray(out), np.asarray(ref), rtol=2e-3, atol=2e-3)

    print("KERNEL_OK")
</pallas_src>

<mosaic_0001>
module attributes {stable_mosaic.version = 11 : i64} {
  func.func @mhsa_kernel(%arg0: memref<16x32xf32, #tpu.memory_space<vmem>>, %arg1: memref<56x128xf32, #tpu.memory_space<vmem>>, %arg2: memref<16x32xf32, #tpu.memory_space<vmem>>) attributes {dimension_semantics = [], scalar_prefetch = 0 : i64, scratch_operands = 0 : i64, tpu.core_type = #tpu.core_type<tc>} {
    %c0 = arith.constant 0 : index
    %c0_0 = arith.constant 0 : index
    %0 = vector.load %arg1[%c0, %c0_0] : memref<56x128xf32, #tpu.memory_space<vmem>>, vector<32x96xf32>
    %c32 = arith.constant 32 : index
    %c0_1 = arith.constant 0 : index
    %1 = vector.load %arg1[%c32, %c0_1] : memref<56x128xf32, #tpu.memory_space<vmem>>, vector<1x96xf32>
    %c0_2 = arith.constant 0 : index
    %c96 = arith.constant 96 : index
    %2 = vector.load %arg1[%c0_2, %c96] : memref<56x128xf32, #tpu.memory_space<vmem>>, vector<32x32xf32>
    %c32_3 = arith.constant 32 : index
    %c96_4 = arith.constant 96 : index
    %3 = vector.load %arg1[%c32_3, %c96_4] : memref<56x128xf32, #tpu.memory_space<vmem>>, vector<1x32xf32>
    %c40 = arith.constant 40 : index
    %c0_5 = arith.constant 0 : index
    %4 = vector.load %arg1[%c40, %c0_5] : memref<56x128xf32, #tpu.memory_space<vmem>>, vector<16x16xf32>
    %c0_6 = arith.constant 0 : index
    %c0_7 = arith.constant 0 : index
    %5 = vector.load %arg0[%c0_6, %c0_7] : memref<16x32xf32, #tpu.memory_space<vmem>>, vector<16x32xf32>
    %cst = arith.constant dense<0.000000e+00> : vector<16x96xf32>
    %6 = tpu.matmul %5, %0, %cst {dimension_numbers = #tpu.dot_dimension_numbers<[1], [0], [0], [1], [0, 0, 1, 1], [], []>} : vector<16x32xf32>, vector<32x96xf32>, vector<16x96xf32> -> vector<16x96xf32>
    %7 = vector.broadcast %1 : vector<1x96xf32> to vector<16x96xf32>
    %8 = arith.addf %6, %7 : vector<16x96xf32>
    %9 = vector.extract_strided_slice %8 {offsets = [0, 0], sizes = [16, 32], strides = [1, 1]} : vector<16x96xf32> to vector<16x32xf32>
    %10 = vector.extract_strided_slice %8 {offsets = [0, 32], sizes = [16, 32], strides = [1, 1]} : vector<16x96xf32> to vector<16x32xf32>
    %11 = vector.extract_strided_slice %8 {offsets = [0, 64], sizes = [16, 32], strides = [1, 1]} : vector<16x96xf32> to vector<16x32xf32>
    %12 = vector.extract_strided_slice %9 {offsets = [0, 0], sizes = [16, 8], strides = [1, 1]} : vector<16x32xf32> to vector<16x8xf32>
    %13 = vector.extract_strided_slice %9 {offsets = [0, 8], sizes = [16, 8], strides = [1, 1]} : vector<16x32xf32> to vector<16x8xf32>
    %14 = vector.extract_strided_slice %9 {offsets = [0, 16], sizes = [16, 8], strides = [1, 1]} : vector<16x32xf32> to vector<16x8xf32>
    %15 = vector.extract_strided_slice %9 {offsets = [0, 24], sizes = [16, 8], strides = [1, 1]} : vector<16x32xf32> to vector<16x8xf32>
    %16 = vector.shape_cast %12 : vector<16x8xf32> to vector<1x16x8xf32>
    %17 = vector.shape_cast %13 : vector<16x8xf32> to vector<1x16x8xf32>
    %18 = vector.shape_cast %14 : vector<16x8xf32> to vector<1x16x8xf32>
    %19 = vector.shape_cast %15 : vector<16x8xf32> to vector<1x16x8xf32>
    %20 = tpu.concatenate %16, %17, %18, %19 in 0 : vector<1x16x8xf32>, vector<1x16x8xf32>, vector<1x16x8xf32>, vector<1x16x8xf32> -> vector<4x16x8xf32>
    %21 = vector.extract_strided_slice %10 {offsets = [0, 0], sizes = [16, 8], strides = [1, 1]} : vector<16x32xf32> to vector<16x8xf32>
    %22 = vector.extract_strided_slice %10 {offsets = [0, 8], sizes = [16, 8], strides = [1, 1]} : vector<16x32xf32> to vector<16x8xf32>
    %23 = vector.extract_strided_slice %10 {offsets = [0, 16], sizes = [16, 8], strides = [1, 1]} : vector<16x32xf32> to vector<16x8xf32>
    %24 = vector.extract_strided_slice %10 {offsets = [0, 24], sizes = [16, 8], strides = [1, 1]} : vector<16x32xf32> to vector<16x8xf32>
    %25 = vector.shape_cast %21 : vector<16x8xf32> to vector<1x16x8xf32>
    %26 = vector.shape_cast %22 : vector<16x8xf32> to vector<1x16x8xf32>
    %27 = vector.shape_cast %23 : vector<16x8xf32> to vector<1x16x8xf32>
    %28 = vector.shape_cast %24 : vector<16x8xf32> to vector<1x16x8xf32>
    %29 = tpu.concatenate %25, %26, %27, %28 in 0 : vector<1x16x8xf32>, vector<1x16x8xf32>, vector<1x16x8xf32>, vector<1x16x8xf32> -> vector<4x16x8xf32>
    %30 = vector.extract_strided_slice %11 {offsets = [0, 0], sizes = [16, 8], strides = [1, 1]} : vector<16x32xf32> to vector<16x8xf32>
    %31 = vector.extract_strided_slice %11 {offsets = [0, 8], sizes = [16, 8], strides = [1, 1]} : vector<16x32xf32> to vector<16x8xf32>
    %32 = vector.extract_strided_slice %11 {offsets = [0, 16], sizes = [16, 8], strides = [1, 1]} : vector<16x32xf32> to vector<16x8xf32>
    %33 = vector.extract_strided_slice %11 {offsets = [0, 24], sizes = [16, 8], strides = [1, 1]} : vector<16x32xf32> to vector<16x8xf32>
    %34 = vector.shape_cast %30 : vector<16x8xf32> to vector<1x16x8xf32>
    %35 = vector.shape_cast %31 : vector<16x8xf32> to vector<1x16x8xf32>
    %36 = vector.shape_cast %32 : vector<16x8xf32> to vector<1x16x8xf32>
    %37 = vector.shape_cast %33 : vector<16x8xf32> to vector<1x16x8xf32>
    %38 = tpu.concatenate %34, %35, %36, %37 in 0 : vector<1x16x8xf32>, vector<1x16x8xf32>, vector<1x16x8xf32>, vector<1x16x8xf32> -> vector<4x16x8xf32>
    "tpu.trace_start"() <{level = 10 : i32, message = "hqd,hkd->hqk"}> : () -> ()
    %cst_8 = arith.constant dense<0.000000e+00> : vector<4x16x16xf32>
    %39 = tpu.matmul %20, %29, %cst_8 {dimension_numbers = #tpu.dot_dimension_numbers<[2], [2], [1], [1], [0, 0, 0, 1, 1, 1], [0], [0]>} : vector<4x16x8xf32>, vector<4x16x8xf32>, vector<4x16x16xf32> -> vector<4x16x16xf32>
    "tpu.trace_stop"() : () -> ()
    %40 = vector.shape_cast %4 : vector<16x16xf32> to vector<1x16x16xf32>
    %41 = vector.broadcast %40 : vector<1x16x16xf32> to vector<4x16x16xf32>
    %42 = arith.addf %39, %41 : vector<4x16x16xf32>
    %cst_9 = arith.constant dense<0xFF800000> : vector<4x16xf32>
    %43 = vector.multi_reduction <maximumf>, %42, %cst_9 [2] : vector<4x16x16xf32> to vector<4x16xf32>
    %44 = vector.shape_cast %43 : vector<4x16xf32> to vector<4x16x1xf32>
    %45 = vector.broadcast %44 : vector<4x16x1xf32> to vector<4x16x16xf32>
    %46 = arith.subf %42, %45 : vector<4x16x16xf32>
    %47 = math.exp %46 : vector<4x16x16xf32>
    %cst_10 = arith.constant dense<0.000000e+00> : vector<4x16xf32>
    %48 = vector.multi_reduction <add>, %47, %cst_10 [2] : vector<4x16x16xf32> to vector<4x16xf32>
    %49 = vector.shape_cast %48 : vector<4x16xf32> to vector<4x16x1xf32>
    %50 = tpu.reciprocal %49 {approx = true} : vector<4x16x1xf32> -> vector<4x16x1xf32>
    %51 = vector.broadcast %50 : vector<4x16x1xf32> to vector<4x16x16xf32>
    %52 = arith.mulf %47, %51 : vector<4x16x16xf32>
    "tpu.trace_start"() <{level = 10 : i32, message = "hqk,hkd->hqd"}> : () -> ()
    %cst_11 = arith.constant dense<0.000000e+00> : vector<4x16x8xf32>
    %53 = tpu.matmul %52, %38, %cst_11 {dimension_numbers = #tpu.dot_dimension_numbers<[2], [1], [1], [2], [0, 0, 0, 1, 1, 2], [0], [0]>} : vector<4x16x16xf32>, vector<4x16x8xf32>, vector<4x16x8xf32> -> vector<4x16x8xf32>
    "tpu.trace_stop"() : () -> ()
    %54 = vector.extract_strided_slice %53 {offsets = [0, 0, 0], sizes = [1, 16, 8], strides = [1, 1, 1]} : vector<4x16x8xf32> to vector<1x16x8xf32>
    %55 = vector.shape_cast %54 : vector<1x16x8xf32> to vector<16x8xf32>
    %56 = vector.extract_strided_slice %53 {offsets = [1, 0, 0], sizes = [1, 16, 8], strides = [1, 1, 1]} : vector<4x16x8xf32> to vector<1x16x8xf32>
    %57 = vector.shape_cast %56 : vector<1x16x8xf32> to vector<16x8xf32>
    %58 = vector.extract_strided_slice %53 {offsets = [2, 0, 0], sizes = [1, 16, 8], strides = [1, 1, 1]} : vector<4x16x8xf32> to vector<1x16x8xf32>
    %59 = vector.shape_cast %58 : vector<1x16x8xf32> to vector<16x8xf32>
    %60 = vector.extract_strided_slice %53 {offsets = [3, 0, 0], sizes = [1, 16, 8], strides = [1, 1, 1]} : vector<4x16x8xf32> to vector<1x16x8xf32>
    %61 = vector.shape_cast %60 : vector<1x16x8xf32> to vector<16x8xf32>
    %62 = tpu.concatenate %55, %57, %59, %61 in 1 : vector<16x8xf32>, vector<16x8xf32>, vector<16x8xf32>, vector<16x8xf32> -> vector<16x32xf32>
    %cst_12 = arith.constant dense<0.000000e+00> : vector<16x32xf32>
    %63 = tpu.matmul %62, %2, %cst_12 {dimension_numbers = #tpu.dot_dimension_numbers<[1], [0], [0], [1], [0, 0, 1, 1], [], []>} : vector<16x32xf32>, vector<32x32xf32>, vector<16x32xf32> -> vector<16x32xf32>
    %64 = vector.broadcast %3 : vector<1x32xf32> to vector<16x32xf32>
    %65 = arith.addf %63, %64 : vector<16x32xf32>
    %c0_13 = arith.constant 0 : index
    %c0_14 = arith.constant 0 : index
    %66 = vector.load %arg2[%c0_13, %c0_14] : memref<16x32xf32, #tpu.memory_space<vmem>>, vector<16x32xf32>
    tpu.vector_store %arg2[%c0_13, %c0_14], %65 {strides = array<i32>} : memref<16x32xf32, #tpu.memory_space<vmem>>, vector<16x32xf32>,
    return
  }
}

</mosaic_0001>

<llo_original>
// kernel: tpu_custom_call.1
$region0: #{tpu_custom_call.1}
  #allocation0 [shape = 'u32[]', space=smem, size = 0x4, offset = 0x4, fixed_abs, tag = 'smem constant byte address 0x4 - core index']
  #allocation1 [shape = 'u32[144,128]{1,0:T(1,128)}', space=vmem, size = 0x12000, scoped, tag = 'internal scratch']
  %s0 = inlined_call_operand.hbm [shape: f32[16,32], index: 0, kind: input, shape index: {}]
  %s1 = inlined_call_operand.hbm [shape: f32[56,128], index: 1, kind: input, shape index: {}]
  %s2 = inlined_call_operand.hbm [shape: f32[16,32], index: 2, kind: output, shape index: {}]
  %s3 = sld [smem:[#allocation0]]
  $region26: #{tpu_custom_call.1} parent=0
    _
  %s5 = ssub.s32 1, %s3
  %s6 = scalar_select 0, %s5, %s3
  $region1: #{tpu_custom_call.1} parent=0
    #allocation2 [shape = 'u8[8192]{0}', space=vmem, size = 0x2000, scoped, tag = 'input window, operand 0, single buffered']
    #allocation3 [shape = 's32[1]{0}', space=sflag, size = 0x4, scoped, tag = 'scoped memory for tpu_custom_call.1']
    #allocation4 [shape = 's32[1]{0}', space=sflag, size = 0x4, scoped, tag = 'scoped memory for tpu_custom_call.1']
    #allocation5 [shape = 'u8[28672]{0}', space=vmem, size = 0x7000, scoped, tag = 'input window, operand 1, single buffered']
    #allocation6 [shape = 's32[1]{0}', space=sflag, size = 0x4, scoped, tag = 'scoped memory for tpu_custom_call.1']
    #allocation7 [shape = 'u8[8192]{0}', space=vmem, size = 0x2000, scoped, tag = 'output window, operand 0, single buffered']
    %7 = vsyncpa [#allocation3], 0
    %8 = vsyncpa [#allocation6], 0
    %9 = vsyncpa [#allocation4], 0
    // Predicated region
    $region2: #{tpu_custom_call.1} parent=1 // pred_check
      _
    $region3: #{tpu_custom_call.1} parent=1 // pred_check_branch
      %11 = sbr.rel (0) target = $region5
    $region4: #{tpu_custom_call.1} parent=1 // pred_region
      %s13 = ssub.s32 256, 256
      %14 = vsyncadd [#allocation3], %s13
      %s15 = sshll.u32 [#allocation2], 4
      %s16 = int_to_ptr.vmem [resolvable:$true] %s15
      %21 = dma.hbm_to_vmem [thread:$0]  %s0, 256, %s16, [#allocation3], 128, 128, 8
    $region5: #{tpu_custom_call.1} parent=1 // pred_fallthru
      _
    // Predicated region
    $region6: #{tpu_custom_call.1} parent=1 // pred_check
      _
    $region7: #{tpu_custom_call.1} parent=1 // pred_check_branch
      %23 = sbr.rel (0) target = $region9
    $region8: #{tpu_custom_call.1} parent=1 // pred_region
      %s25 = ssub.s32 896, 896
      %26 = vsyncadd [#allocation6], %s25
      %s27 = sshll.u32 [#allocation5], 4
      %s28 = int_to_ptr.vmem [resolvable:$true] %s27
      %33 = dma.hbm_to_vmem [thread:$0]  %s1, 896, %s28, [#allocation6], 128, 128, 8
    $region9: #{tpu_custom_call.1} parent=1 // pred_fallthru
      _
    // Predicated region
    $region10: #{tpu_custom_call.1} parent=1 // pred_check
      _
    $region11: #{tpu_custom_call.1} parent=1 // pred_check_branch
      %35 = sbr.rel (0) target = $region13
    $region12: #{tpu_custom_call.1} parent=1 // pred_region
      %36 = dma.done [#allocation3], 256
    $region13: #{tpu_custom_call.1} parent=1 // pred_fallthru
      _
    // Predicated region
    $region14: #{tpu_custom_call.1} parent=1 // pred_check
      _
    $region15: #{tpu_custom_call.1} parent=1 // pred_check_branch
      %38 = sbr.rel (0) target = $region17
    $region16: #{tpu_custom_call.1} parent=1 // pred_region
      %39 = dma.done [#allocation6], 896
    $region17: #{tpu_custom_call.1} parent=1 // pred_fallthru
      _
    %v40 = vld [vmem:[#allocation5] sm:$0xff]
    %v41 = vld [vmem:[#allocation5 + $0x8] sm:$0xff]
    %v42 = vld [vmem:[#allocation5 + $0x10] sm:$0xff]
    %v43 = vld [vmem:[#allocation5 + $0x18] sm:$0xff]
    %v44 = vld [vmem:[#allocation5 + $0x20] sm:$0x1]
    %v45 = vld [vmem:[#allocation5 + $0x28] sm:$0xff]
    %v46 = vld [vmem:[#allocation5 + $0x30] sm:$0xff]
    %v47 = vld [vmem:[#allocation2] sm:$0xff]
    %v48 = vld [vmem:[#allocation2 + $0x8] sm:$0xff]
    %v49 = vlaneseq
    %v50 = vshrl.u32 %v49, 7
    %v51 = vsub.s32 0, %v50
    %v52 = vrot.slane %v44, %v51
    %vm53 = vcmask 261120
    %v55 = vsel %vm53, %v47, 0
    %v58 = vsel %vm53, %v48, 0
    %60 = vmatprep.subr.mxu0 0.0
    %61 = vmatpush1.msra.mxu0 %v40
    %62 = vmatprep.subr.mxu0 0.0
    %63 = vmatpush1.msra.mxu0 %v41
    %64 = vmatprep.subr.mxu0 0.0
    %65 = vmatpush1.msra.mxu0 %v42
    %66 = vmatprep.subr.mxu0 0.0
    %67 = vmatpush1.msra.mxu0 %v43
    %68 = vmatprep.subr.mxu0 0.0
    %69 = vmatpush1.msra.mxu0 0.0
    %70 = vmatprep.subr.mxu0 0.0
    %71 = vmatpush1.msra.mxu0 0.0
    %72 = vmatprep.subr.mxu0 0.0
    %73 = vmatpush1.msra.mxu0 0.0
    %74 = vmatprep.subr.mxu0 0.0
    %75 = vmatpush1.msra.mxu0 0.0
    %76 = vmatprep.subr.mxu0 0.0
    %77 = vmatpush1.msra.mxu0 0.0
    %78 = vmatprep.subr.mxu0 0.0
    %79 = vmatpush1.msra.mxu0 0.0
    %80 = vmatprep.subr.mxu0 0.0
    %81 = vmatpush1.msra.mxu0 0.0
    %82 = vmatprep.subr.mxu0 0.0
    %83 = vmatpush1.msra.mxu0 0.0
    %84 = vmatprep.subr.mxu0 0.0
    %85 = vmatpush1.msra.mxu0 0.0
    %86 = vmatprep.subr.mxu0 0.0
    %87 = vmatpush1.msra.mxu0 0.0
    %88 = vmatprep.subr.mxu0 0.0
    %89 = vmatpush1.msra.mxu0 0.0
    %90 = vmatprep.subr.mxu0 0.0
    %91 = vmatpush1.msra.mxu0 0.0
    %92 = vmatprep.subr.mxu0 0.0
    %93 = vmatpush1.msra.mxu0 0.0
    %94 = vmatprep.subr.mxu0 0.0
    %95 = vmatpush1.msra.mxu0 0.0
    %96 = vmatprep.subr.mxu0 0.0
    %97 = vmatpush1.msra.mxu0 0.0
    %98 = vmatprep.subr.mxu0 0.0
    %99 = vmatpush1.msra.mxu0 0.0
    %100 = vmatprep.subr.mxu0 0.0
    %101 = vmatpush1.msra.mxu0 0.0
    %102 = vmatprep.subr.mxu0 0.0
    %103 = vmatpush1.msra.mxu0 0.0
    %104 = vmatprep.subr.mxu0 0.0
    %105 = vmatpush1.msra.mxu0 0.0
    %106 = vmatprep.subr.mxu0 0.0
    %107 = vmatpush1.msra.mxu0 0.0
    %108 = vmatprep.subr.mxu0 0.0
    %109 = vmatpush1.msra.mxu0 0.0
    %110 = vmatprep.subr.mxu0 0.0
    %111 = vmatpush1.msra.mxu0 0.0
    %112 = vmatprep.subr.mxu0 0.0
    %113 = vmatpush1.msra.mxu0 0.0
    %114 = vmatprep.subr.mxu0 0.0
    %115 = vmatpush1.msra.mxu0 0.0
    %116 = vmatprep.subr.mxu0 0.0
    %117 = vmatpush1.msra.mxu0 0.0
    %118 = vmatprep.subr.mxu0 0.0
    %119 = vmatpush1.msra.mxu0 0.0
    %120 = vmatprep.subr.mxu0 0.0
    %121 = vmatpush1.msra.mxu0 0.0
    %122 = vmatprep.subr.mxu0 0.0
    %123 = vmatpush1.msra.mxu0 0.0
    %124 = vmatprep.mubr.f32.mxu0 0.0
    %125 = vmatmul.mubr.f32.gmra.mrb[0].mxu0 %v55
    %v126 = vpop.f32.mrb[0].mxu0
    %v127 = vadd.f32 %v52, %v126
    %v128 = vpop.f32.mrb[0].mxu0
    %129 = vmatprep.mubr.f32.mxu0 0.0
    %130 = vmatmul.mubr.f32.gmra.mrb[0].mxu0 %v58
    %v131 = vpop.f32.mrb[0].mxu0
    %v132 = vadd.f32 %v52, %v131
    %v133 = vpop.f32.mrb[0].mxu0
    %134 = vdwg.mxu0
    %137 = vrot.lane.b32.xlu0 %v127, 120
    %v138 = vpop.permute.xlu0 %137
    %139 = vrot.lane.b32.xlu0 %v132, 120
    %v140 = vpop.permute.xlu0 %139
    %141 = vrot.lane.b32.xlu0 %v127, 112
    %v142 = vpop.permute.xlu0 %141
    %143 = vrot.lane.b32.xlu0 %v132, 112
    %v144 = vpop.permute.xlu0 %143
    %145 = vrot.lane.b32.xlu0 %v127, 104
    %v146 = vpop.permute.xlu0 %145
    %147 = vrot.lane.b32.xlu0 %v132, 104
    %v148 = vpop.permute.xlu0 %147
    %149 = vrot.lane.b32.xlu0 %v127, 96
    %v150 = vpop.permute.xlu0 %149
    %151 = vrot.lane.b32.xlu0 %v132, 96
    %v152 = vpop.permute.xlu0 %151
    %vm153 = vcmask 64512
    %v154 = vsel %vm153, %v127, 0
    %v156 = vsel %vm153, %v132, 0
    %v158 = vsel %vm153, %v150, 0
    %v160 = vsel %vm153, %v152, 0
    %162 = vmatprep.subr.mxu0 0.0
    %163 = vmatpush1.xpose.msra.mxu0 %v158
    %164 = vmatprep.subr.mxu0 0.0
    %165 = vmatpush1.xpose.msra.mxu0 %v160
    %166 = vmatprep.subr.mxu0 0.0
    %167 = vmatpush1.xpose.msra.mxu0 0.0
    %168 = vmatprep.subr.mxu0 0.0
    %169 = vmatpush1.xpose.msra.mxu0 0.0
    %170 = vmatprep.subr.mxu0 0.0
    %171 = vmatpush1.xpose.msra.mxu0 0.0
    %172 = vmatprep.subr.mxu0 0.0
    %173 = vmatpush1.xpose.msra.mxu0 0.0
    %174 = vmatprep.subr.mxu0 0.0
    %175 = vmatpush1.xpose.msra.mxu0 0.0
    %176 = vmatprep.subr.mxu0 0.0
    %177 = vmatpush1.xpose.msra.mxu0 0.0
    %178 = vmatprep.subr.mxu0 0.0
    %179 = vmatpush1.xpose.msra.mxu0 0.0
    %180 = vmatprep.subr.mxu0 0.0
    %181 = vmatpush1.xpose.msra.mxu0 0.0
    %182 = vmatprep.subr.mxu0 0.0
    %183 = vmatpush1.xpose.msra.mxu0 0.0
    %184 = vmatprep.subr.mxu0 0.0
    %185 = vmatpush1.xpose.msra.mxu0 0.0
    %186 = vmatprep.subr.mxu0 0.0
    %187 = vmatpush1.xpose.msra.mxu0 0.0
    %188 = vmatprep.subr.mxu0 0.0
    %189 = vmatpush1.xpose.msra.mxu0 0.0
    %190 = vmatprep.subr.mxu0 0.0
    %191 = vmatpush1.xpose.msra.mxu0 0.0
    %192 = vmatprep.subr.mxu0 0.0
    %193 = vmatpush1.xpose.msra.mxu0 0.0
    %194 = vmatprep.subr.mxu0 0.0
    %195 = vmatpush1.xpose.msra.mxu0 0.0
    %196 = vmatprep.subr.mxu0 0.0
    %197 = vmatpush1.xpose.msra.mxu0 0.0
    %198 = vmatprep.subr.mxu0 0.0
    %199 = vmatpush1.xpose.msra.mxu0 0.0
    %200 = vmatprep.subr.mxu0 0.0
    %201 = vmatpush1.xpose.msra.mxu0 0.0
    %202 = vmatprep.subr.mxu0 0.0
    %203 = vmatpush1.xpose.msra.mxu0 0.0
    %204 = vmatprep.subr.mxu0 0.0
    %205 = vmatpush1.xpose.msra.mxu0 0.0
    %206 = vmatprep.subr.mxu0 0.0
    %207 = vmatpush1.xpose.msra.mxu0 0.0
    %208 = vmatprep.subr.mxu0 0.0
    %209 = vmatpush1.xpose.msra.mxu0 0.0
    %210 = vmatprep.subr.mxu0 0.0
    %211 = vmatpush1.xpose.msra.mxu0 0.0
    %212 = vmatprep.subr.mxu0 0.0
    %213 = vmatpush1.xpose.msra.mxu0 0.0
    %214 = vmatprep.subr.mxu0 0.0
    %215 = vmatpush1.xpose.msra.mxu0 0.0
    %216 = vmatprep.subr.mxu0 0.0
    %217 = vmatpush1.xpose.msra.mxu0 0.0
    %218 = vmatprep.subr.mxu0 0.0
    %219 = vmatpush1.xpose.msra.mxu0 0.0
    %220 = vmatprep.subr.mxu0 0.0
    %221 = vmatpush1.xpose.msra.mxu0 0.0
    %222 = vmatprep.subr.mxu0 0.0
    %223 = vmatpush1.xpose.msra.mxu0 0.0
    %224 = vmatprep.subr.mxu0 0.0
    %225 = vmatpush1.xpose.msra.mxu0 0.0
    %226 = vmatprep.mubr.f32.mxu0 0.0
    %227 = vmatmul.mubr.f32.gmra.mrb[0].mxu0 %v154
    %v228 = vpop.f32.mrb[0].mxu0
    %v229 = vadd.f32 %v45, %v228
    %v230 = vpop.f32.mrb[0].mxu0
    %231 = vmatprep.mubr.f32.mxu0 0.0
    %232 = vmatmul.mubr.f32.gmra.mrb[0].mxu0 %v156
    %v233 = vpop.f32.mrb[0].mxu0
    %v234 = vadd.f32 %v46, %v233
    %v235 = vpop.f32.mrb[0].mxu0
    %236 = vdwg.mxu0
    %237 = vrot.lane.b32.xlu0 %v138, 96
    %v238 = vpop.permute.xlu0 %237
    %239 = vrot.lane.b32.xlu0 %v140, 96
    %v240 = vpop.permute.xlu0 %239
    %v241 = vsel %vm153, %v138, 0
    %v243 = vsel %vm153, %v140, 0
    %v245 = vsel %vm153, %v238, 0
    %v247 = vsel %vm153, %v240, 0
    %249 = vmatprep.subr.mxu0 0.0
    %250 = vmatpush1.xpose.msra.mxu0 %v245
    %251 = vmatprep.subr.mxu0 0.0
    %252 = vmatpush1.xpose.msra.mxu0 %v247
    %253 = vmatprep.subr.mxu0 0.0
    %254 = vmatpush1.xpose.msra.mxu0 0.0
    %255 = vmatprep.subr.mxu0 0.0
    %256 = vmatpush1.xpose.msra.mxu0 0.0
    %257 = vmatprep.subr.mxu0 0.0
    %258 = vmatpush1.xpose.msra.mxu0 0.0
    %259 = vmatprep.subr.mxu0 0.0
    %260 = vmatpush1.xpose.msra.mxu0 0.0
    %261 = vmatprep.subr.mxu0 0.0
    %262 = vmatpush1.xpose.msra.mxu0 0.0
    %263 = vmatprep.subr.mxu0 0.0
    %264 = vmatpush1.xpose.msra.mxu0 0.0
    %265 = vmatprep.subr.mxu0 0.0
    %266 = vmatpush1.xpose.msra.mxu0 0.0
    %267 = vmatprep.subr.mxu0 0.0
    %268 = vmatpush1.xpose.msra.mxu0 0.0
    %269 = vmatprep.subr.mxu0 0.0
    %270 = vmatpush1.xpose.msra.mxu0 0.0
    %271 = vmatprep.subr.mxu0 0.0
    %272 = vmatpush1.xpose.msra.mxu0 0.0
    %273 = vmatprep.subr.mxu0 0.0
    %274 = vmatpush1.xpose.msra.mxu0 0.0
    %275 = vmatprep.subr.mxu0 0.0
    %276 = vmatpush1.xpose.msra.mxu0 0.0
    %277 = vmatprep.subr.mxu0 0.0
    %278 = vmatpush1.xpose.msra.mxu0 0.0
    %279 = vmatprep.subr.mxu0 0.0
    %280 = vmatpush1.xpose.msra.mxu0 0.0
    %281 = vmatprep.subr.mxu0 0.0
    %282 = vmatpush1.xpose.msra.mxu0 0.0
    %283 = vmatprep.subr.mxu0 0.0
    %284 = vmatpush1.xpose.msra.mxu0 0.0
    %285 = vmatprep.subr.mxu0 0.0
    %286 = vmatpush1.xpose.msra.mxu0 0.0
    %287 = vmatprep.subr.mxu0 0.0
    %288 = vmatpush1.xpose.msra.mxu0 0.0
    %289 = vmatprep.subr.mxu0 0.0
    %290 = vmatpush1.xpose.msra.mxu0 0.0
    %291 = vmatprep.subr.mxu0 0.0
    %292 = vmatpush1.xpose.msra.mxu0 0.0
    %293 = vmatprep.subr.mxu0 0.0
    %294 = vmatpush1.xpose.msra.mxu0 0.0
    %295 = vmatprep.subr.mxu0 0.0
    %296 = vmatpush1.xpose.msra.mxu0 0.0
    %297 = vmatprep.subr.mxu0 0.0
    %298 = vmatpush1.xpose.msra.mxu0 0.0
    %299 = vmatprep.subr.mxu0 0.0
    %300 = vmatpush1.xpose.msra.mxu0 0.0
    %301 = vmatprep.subr.mxu0 0.0
    %302 = vmatpush1.xpose.msra.mxu0 0.0
    %303 = vmatprep.subr.mxu0 0.0
    %304 = vmatpush1.xpose.msra.mxu0 0.0
    %305 = vmatprep.subr.mxu0 0.0
    %306 = vmatpush1.xpose.msra.mxu0 0.0
    %307 = vmatprep.subr.mxu0 0.0
    %308 = vmatpush1.xpose.msra.mxu0 0.0
    %309 = vmatprep.subr.mxu0 0.0
    %310 = vmatpush1.xpose.msra.mxu0 0.0
    %311 = vmatprep.subr.mxu0 0.0
    %312 = vmatpush1.xpose.msra.mxu0 0.0
    %313 = vmatprep.mubr.f32.mxu0 0.0
    %314 = vmatmul.mubr.f32.gmra.mrb[0].mxu0 %v241
    %v315 = vpop.f32.mrb[0].mxu0
    %v316 = vadd.f32 %v45, %v315
    %v317 = vpop.f32.mrb[0].mxu0
    %318 = vmatprep.mubr.f32.mxu0 0.0
    %319 = vmatmul.mubr.f32.gmra.mrb[0].mxu0 %v243
    %v320 = vpop.f32.mrb[0].mxu0
    %v321 = vadd.f32 %v46, %v320
    %v322 = vpop.f32.mrb[0].mxu0
    %323 = vdwg.mxu0
    %324 = vrot.lane.b32.xlu0 %v142, 96
    %v325 = vpop.permute.xlu0 %324
    %326 = vrot.lane.b32.xlu0 %v144, 96
    %v327 = vpop.permute.xlu0 %326
    %v328 = vsel %vm153, %v142, 0
    %v330 = vsel %vm153, %v144, 0
    %v332 = vsel %vm153, %v325, 0
    %v334 = vsel %vm153, %v327, 0
    %336 = vmatprep.subr.mxu0 0.0
    %337 = vmatpush1.xpose.msra.mxu0 %v332
    %338 = vmatprep.subr.mxu0 0.0
    %339 = vmatpush1.xpose.msra.mxu0 %v334
    %340 = vmatprep.subr.mxu0 0.0
    %341 = vmatpush1.xpose.msra.mxu0 0.0
    %342 = vmatprep.subr.mxu0 0.0
    %343 = vmatpush1.xpose.msra.mxu0 0.0
    %344 = vmatprep.subr.mxu0 0.0
    %345 = vmatpush1.xpose.msra.mxu0 0.0
    %346 = vmatprep.subr.mxu0 0.0
    %347 = vmatpush1.xpose.msra.mxu0 0.0
    %348 = vmatprep.subr.mxu0 0.0
    %349 = vmatpush1.xpose.msra.mxu0 0.0
    %350 = vmatprep.subr.mxu0 0.0
    %351 = vmatpush1.xpose.msra.mxu0 0.0
    %352 = vmatprep.subr.mxu0 0.0
    %353 = vmatpush1.xpose.msra.mxu0 0.0
    %354 = vmatprep.subr.mxu0 0.0
    %355 = vmatpush1.xpose.msra.mxu0 0.0
    %356 = vmatprep.subr.mxu0 0.0
    %357 = vmatpush1.xpose.msra.mxu0 0.0
    %358 = vmatprep.subr.mxu0 0.0
    %359 = vmatpush1.xpose.msra.mxu0 0.0
    %360 = vmatprep.subr.mxu0 0.0
    %361 = vmatpush1.xpose.msra.mxu0 0.0
    %362 = vmatprep.subr.mxu0 0.0
    %363 = vmatpush1.xpose.msra.mxu0 0.0
    %364 = vmatprep.subr.mxu0 0.0
    %365 = vmatpush1.xpose.msra.mxu0 0.0
    %366 = vmatprep.subr.mxu0 0.0
    %367 = vmatpush1.xpose.msra.mxu0 0.0
    %368 = vmatprep.subr.mxu0 0.0
    %369 = vmatpush1.xpose.msra.mxu0 0.0
    %370 = vmatprep.subr.mxu0 0.0
    %371 = vmatpush1.xpose.msra.mxu0 0.0
    %372 = vmatprep.subr.mxu0 0.0
    %373 = vmatpush1.xpose.msra.mxu0 0.0
    %374 = vmatprep.subr.mxu0 0.0
    %375 = vmatpush1.xpose.msra.mxu0 0.0
    %376 = vmatprep.subr.mxu0 0.0
    %377 = vmatpush1.xpose.msra.mxu0 0.0
    %378 = vmatprep.subr.mxu0 0.0
    %379 = vmatpush1.xpose.msra.mxu0 0.0
    %380 = vmatprep.subr.mxu0 0.0
    %381 = vmatpush1.xpose.msra.mxu0 0.0
    %382 = vmatprep.subr.mxu0 0.0
    %383 = vmatpush1.xpose.msra.mxu0 0.0
    %384 = vmatprep.subr.mxu0 0.0
    %385 = vmatpush1.xpose.msra.mxu0 0.0
    %386 = vmatprep.subr.mxu0 0.0
    %387 = vmatpush1.xpose.msra.mxu0 0.0
    %388 = vmatprep.subr.mxu0 0.0
    %389 = vmatpush1.xpose.msra.mxu0 0.0
    %390 = vmatprep.subr.mxu0 0.0
    %391 = vmatpush1.xpose.msra.mxu0 0.0
    %392 = vmatprep.subr.mxu0 0.0
    %393 = vmatpush1.xpose.msra.mxu0 0.0
    %394 = vmatprep.subr.mxu0 0.0
    %395 = vmatpush1.xpose.msra.mxu0 0.0
    %396 = vmatprep.subr.mxu0 0.0
    %397 = vmatpush1.xpose.msra.mxu0 0.0
    %398 = vmatprep.subr.mxu0 0.0
    %399 = vmatpush1.xpose.msra.mxu0 0.0
    %400 = vmatprep.mubr.f32.mxu0 0.0
    %401 = vmatmul.mubr.f32.gmra.mrb[0].mxu0 %v328
    %v402 = vpop.f32.mrb[0].mxu0
    %v403 = vadd.f32 %v45, %v402
    %v404 = vpop.f32.mrb[0].mxu0
    %405 = vmatprep.mubr.f32.mxu0 0.0
    %406 = vmatmul.mubr.f32.gmra.mrb[0].mxu0 %v330
    %v407 = vpop.f32.mrb[0].mxu0
    %v408 = vadd.f32 %v46, %v407
    %v409 = vpop.f32.mrb[0].mxu0
    %410 = vdwg.mxu0
    %411 = vrot.lane.b32.xlu0 %v146, 96
    %v412 = vpop.permute.xlu0 %411
    %413 = vrot.lane.b32.xlu0 %v148, 96
    %v414 = vpop.permute.xlu0 %413
    %v415 = vsel %vm153, %v146, 0
    %v417 = vsel %vm153, %v148, 0
    %v419 = vsel %vm153, %v412, 0
    %v421 = vsel %vm153, %v414, 0
    %423 = vmatprep.subr.mxu0 0.0
    %424 = vmatpush1.xpose.msra.mxu0 %v419
    %425 = vmatprep.subr.mxu0 0.0
    %426 = vmatpush1.xpose.msra.mxu0 %v421
    %427 = vmatprep.subr.mxu0 0.0
    %428 = vmatpush1.xpose.msra.mxu0 0.0
    %429 = vmatprep.subr.mxu0 0.0
    %430 = vmatpush1.xpose.msra.mxu0 0.0
    %431 = vmatprep.subr.mxu0 0.0
    %432 = vmatpush1.xpose.msra.mxu0 0.0
    %433 = vmatprep.subr.mxu0 0.0
    %434 = vmatpush1.xpose.msra.mxu0 0.0
    %435 = vmatprep.subr.mxu0 0.0
    %436 = vmatpush1.xpose.msra.mxu0 0.0
    %437 = vmatprep.subr.mxu0 0.0
    %438 = vmatpush1.xpose.msra.mxu0 0.0
    %439 = vmatprep.subr.mxu0 0.0
    %440 = vmatpush1.xpose.msra.mxu0 0.0
    %441 = vmatprep.subr.mxu0 0.0
    %442 = vmatpush1.xpose.msra.mxu0 0.0
    %443 = vmatprep.subr.mxu0 0.0
    %444 = vmatpush1.xpose.msra.mxu0 0.0
    %445 = vmatprep.subr.mxu0 0.0
    %446 = vmatpush1.xpose.msra.mxu0 0.0
    %447 = vmatprep.subr.mxu0 0.0
    %448 = vmatpush1.xpose.msra.mxu0 0.0
    %449 = vmatprep.subr.mxu0 0.0
    %450 = vmatpush1.xpose.msra.mxu0 0.0
    %451 = vmatprep.subr.mxu0 0.0
    %452 = vmatpush1.xpose.msra.mxu0 0.0
    %453 = vmatprep.subr.mxu0 0.0
    %454 = vmatpush1.xpose.msra.mxu0 0.0
    %455 = vmatprep.subr.mxu0 0.0
    %456 = vmatpush1.xpose.msra.mxu0 0.0
    %457 = vmatprep.subr.mxu0 0.0
    %458 = vmatpush1.xpose.msra.mxu0 0.0
    %459 = vmatprep.subr.mxu0 0.0
    %460 = vmatpush1.xpose.msra.mxu0 0.0
    %461 = vmatprep.subr.mxu0 0.0
    %462 = vmatpush1.xpose.msra.mxu0 0.0
    %463 = vmatprep.subr.mxu0 0.0
    %464 = vmatpush1.xpose.msra.mxu0 0.0
    %465 = vmatprep.subr.mxu0 0.0
    %466 = vmatpush1.xpose.msra.mxu0 0.0
    %467 = vmatprep.subr.mxu0 0.0
    %468 = vmatpush1.xpose.msra.mxu0 0.0
    %469 = vmatprep.subr.mxu0 0.0
    %470 = vmatpush1.xpose.msra.mxu0 0.0
    %471 = vmatprep.subr.mxu0 0.0
    %472 = vmatpush1.xpose.msra.mxu0 0.0
    %473 = vmatprep.subr.mxu0 0.0
    %474 = vmatpush1.xpose.msra.mxu0 0.0
    %475 = vmatprep.subr.mxu0 0.0
    %476 = vmatpush1.xpose.msra.mxu0 0.0
    %477 = vmatprep.subr.mxu0 0.0
    %478 = vmatpush1.xpose.msra.mxu0 0.0
    %479 = vmatprep.subr.mxu0 0.0
    %480 = vmatpush1.xpose.msra.mxu0 0.0
    %481 = vmatprep.subr.mxu0 0.0
    %482 = vmatpush1.xpose.msra.mxu0 0.0
    %483 = vmatprep.subr.mxu0 0.0
    %484 = vmatpush1.xpose.msra.mxu0 0.0
    %485 = vmatprep.subr.mxu0 0.0
    %486 = vmatpush1.xpose.msra.mxu0 0.0
    %487 = vmatprep.mubr.f32.mxu0 0.0
    %488 = vmatmul.mubr.f32.gmra.mrb[0].mxu0 %v415
    %v489 = vpop.f32.mrb[0].mxu0
    %v490 = vadd.f32 %v45, %v489
    %v491 = vpop.f32.mrb[0].mxu0
    %492 = vmatprep.mubr.f32.mxu0 0.0
    %493 = vmatmul.mubr.f32.gmra.mrb[0].mxu0 %v417
    %v494 = vpop.f32.mrb[0].mxu0
    %v495 = vadd.f32 %v46, %v494
    %v496 = vpop.f32.mrb[0].mxu0
    %497 = vdwg.mxu0
    %vm498 = vcmask 130048
    %v499 = vsel %vm498, %v229, -inf
    %500 = vmax.xlane.f32.xlu0 %v499
    %v501 = vpop.xlane.xlu0 %500
    %v502 = vsel %vm498, %v234, -inf
    %503 = vmax.xlane.f32.xlu0 %v502
    %v504 = vpop.xlane.xlu0 %503
    %v505 = vsel %vm498, %v316, -inf
    %506 = vmax.xlane.f32.xlu0 %v505
    %v507 = vpop.xlane.xlu0 %506
    %v508 = vsel %vm498, %v321, -inf
    %509 = vmax.xlane.f32.xlu0 %v508
    %v510 = vpop.xlane.xlu0 %509
    %v511 = vsel %vm498, %v403, -inf
    %512 = vmax.xlane.f32.xlu0 %v511
    %v513 = vpop.xlane.xlu0 %512
    %v514 = vsel %vm498, %v408, -inf
    %515 = vmax.xlane.f32.xlu0 %v514
    %v516 = vpop.xlane.xlu0 %515
    %v517 = vsel %vm498, %v490, -inf
    %518 = vmax.xlane.f32.xlu0 %v517
    %v519 = vpop.xlane.xlu0 %518
    %v520 = vsel %vm498, %v495, -inf
    %521 = vmax.xlane.f32.xlu0 %v520
    %v522 = vpop.xlane.xlu0 %521
    %v523 = vsub.f32 %v229, %v501
    %v524 = vsub.f32 %v234, %v504
    %v525 = vsub.f32 %v316, %v507
    %v526 = vsub.f32 %v321, %v510
    %v527 = vsub.f32 %v403, %v513
    %v528 = vsub.f32 %v408, %v516
    %v529 = vsub.f32 %v490, %v519
    %v530 = vsub.f32 %v495, %v522
    %v531 = vmul.f32 %v523, 1.442695
    %v532 = vpow.pop %v531
    %v533 = vmul.f32 %v524, 1.442695
    %v534 = vpow.pop %v533
    %v535 = vmul.f32 %v525, 1.442695
    %v536 = vpow.pop %v535
    %v537 = vmul.f32 %v526, 1.442695
    %v538 = vpow.pop %v537
    %v539 = vmul.f32 %v527, 1.442695
    %v540 = vpow.pop %v539
    %v541 = vmul.f32 %v528, 1.442695
    %v542 = vpow.pop %v541
    %v543 = vmul.f32 %v529, 1.442695
    %v544 = vpow.pop %v543
    %v545 = vmul.f32 %v530, 1.442695
    %v546 = vpow.pop %v545
    %v547 = vsel %vm498, %v532, 0.0
    %548 = vadd.xlane.f32.xlu0 %v547
    %v549 = vpop.xlane.xlu0 %548
    %v550 = vsel %vm498, %v534, 0.0
    %551 = vadd.xlane.f32.xlu0 %v550
    %v552 = vpop.xlane.xlu0 %551
    %v553 = vsel %vm498, %v536, 0.0
    %554 = vadd.xlane.f32.xlu0 %v553
    %v555 = vpop.xlane.xlu0 %554
    %v556 = vsel %vm498, %v538, 0.0
    %557 = vadd.xlane.f32.xlu0 %v556
    %v558 = vpop.xlane.xlu0 %557
    %v559 = vsel %vm498, %v540, 0.0
    %560 = vadd.xlane.f32.xlu0 %v559
    %v561 = vpop.xlane.xlu0 %560
    %v562 = vsel %vm498, %v542, 0.0
    %563 = vadd.xlane.f32.xlu0 %v562
    %v564 = vpop.xlane.xlu0 %563
    %v565 = vsel %vm498, %v544, 0.0
    %566 = vadd.xlane.f32.xlu0 %v565
    %v567 = vpop.xlane.xlu0 %566
    %v568 = vsel %vm498, %v546, 0.0
    %569 = vadd.xlane.f32.xlu0 %v568
    %v570 = vpop.xlane.xlu0 %569
    %v571 = vrcp.pop %v549
    %v572 = vrcp.pop %v552
    %v573 = vrcp.pop %v555
    %v574 = vrcp.pop %v558
    %v575 = vrcp.pop %v561
    %v576 = vrcp.pop %v564
    %v577 = vrcp.pop %v567
    %v578 = vrcp.pop %v570
    %v579 = vmul.f32 %v532, %v571
    %v580 = vmul.f32 %v534, %v572
    %v581 = vmul.f32 %v536, %v573
    %v582 = vmul.f32 %v538, %v574
    %v583 = vmul.f32 %v540, %v575
    %v584 = vmul.f32 %v542, %v576
    %v585 = vmul.f32 %v544, %v577
    %v586 = vmul.f32 %v546, %v578
    %587 = vrot.lane.b32.xlu0 %v127, 64
    %v588 = vpop.permute.xlu0 %587
    %589 = vrot.lane.b32.xlu0 %v132, 64
    %v590 = vpop.permute.xlu0 %589
    %v594 = vsel %vm498, %v579, 0
    %v597 = vsel %vm498, %v580, 0
    %599 = vmatprep.subr.mxu0 0.0
    %600 = vmatpush1.msra.mxu0 %v588
    %601 = vmatprep.subr.mxu0 0.0
    %602 = vmatpush1.msra.mxu0 %v590
    %603 = vmatprep.subr.mxu0 0.0
    %604 = vmatpush1.msra.mxu0 0.0
    %605 = vmatprep.subr.mxu0 0.0
    %606 = vmatpush1.msra.mxu0 0.0
    %607 = vmatprep.subr.mxu0 0.0
    %608 = vmatpush1.msra.mxu0 0.0
    %609 = vmatprep.subr.mxu0 0.0
    %610 = vmatpush1.msra.mxu0 0.0
    %611 = vmatprep.subr.mxu0 0.0
    %612 = vmatpush1.msra.mxu0 0.0
    %613 = vmatprep.subr.mxu0 0.0
    %614 = vmatpush1.msra.mxu0 0.0
    %615 = vmatprep.subr.mxu0 0.0
    %616 = vmatpush1.msra.mxu0 0.0
    %617 = vmatprep.subr.mxu0 0.0
    %618 = vmatpush1.msra.mxu0 0.0
    %619 = vmatprep.subr.mxu0 0.0
    %620 = vmatpush1.msra.mxu0 0.0
    %621 = vmatprep.subr.mxu0 0.0
    %622 = vmatpush1.msra.mxu0 0.0
    %623 = vmatprep.subr.mxu0 0.0
    %624 = vmatpush1.msra.mxu0 0.0
    %625 = vmatprep.subr.mxu0 0.0
    %626 = vmatpush1.msra.mxu0 0.0
    %627 = vmatprep.subr.mxu0 0.0
    %628 = vmatpush1.msra.mxu0 0.0
    %629 = vmatprep.subr.mxu0 0.0
    %630 = vmatpush1.msra.mxu0 0.0
    %631 = vmatprep.subr.mxu0 0.0
    %632 = vmatpush1.msra.mxu0 0.0
    %633 = vmatprep.subr.mxu0 0.0
    %634 = vmatpush1.msra.mxu0 0.0
    %635 = vmatprep.subr.mxu0 0.0
    %636 = vmatpush1.msra.mxu0 0.0
    %637 = vmatprep.subr.mxu0 0.0
    %638 = vmatpush1.msra.mxu0 0.0
    %639 = vmatprep.subr.mxu0 0.0
    %640 = vmatpush1.msra.mxu0 0.0
    %641 = vmatprep.subr.mxu0 0.0
    %642 = vmatpush1.msra.mxu0 0.0
    %643 = vmatprep.subr.mxu0 0.0
    %644 = vmatpush1.msra.mxu0 0.0
    %645 = vmatprep.subr.mxu0 0.0
    %646 = vmatpush1.msra.mxu0 0.0
    %647 = vmatprep.subr.mxu0 0.0
    %648 = vmatpush1.msra.mxu0 0.0
    %649 = vmatprep.subr.mxu0 0.0
    %650 = vmatpush1.msra.mxu0 0.0
    %651 = vmatprep.subr.mxu0 0.0
    %652 = vmatpush1.msra.mxu0 0.0
    %653 = vmatprep.subr.mxu0 0.0
    %654 = vmatpush1.msra.mxu0 0.0
    %655 = vmatprep.subr.mxu0 0.0
    %656 = vmatpush1.msra.mxu0 0.0
    %657 = vmatprep.subr.mxu0 0.0
    %658 = vmatpush1.msra.mxu0 0.0
    %659 = vmatprep.subr.mxu0 0.0
    %660 = vmatpush1.msra.mxu0 0.0
    %661 = vmatprep.subr.mxu0 0.0
    %662 = vmatpush1.msra.mxu0 0.0
    %663 = vmatprep.mubr.f32.mxu0 0.0
    %664 = vmatmul.mubr.f32.gmra.mrb[0].mxu0 %v594
    %v665 = vpop.f32.mrb[0].mxu0
    %v666 = vadd.f32 0.0, %v665
    %v667 = vpop.f32.mrb[0].mxu0
    %668 = vmatprep.mubr.f32.mxu0 0.0
    %669 = vmatmul.mubr.f32.gmra.mrb[0].mxu0 %v597
    %v670 = vpop.f32.mrb[0].mxu0
    %v671 = vadd.f32 0.0, %v670
    %v672 = vpop.f32.mrb[0].mxu0
    %673 = vdwg.mxu0
    %674 = vrot.lane.b32.xlu0 %v138, 64
    %v675 = vpop.permute.xlu0 %674
    %676 = vrot.lane.b32.xlu0 %v140, 64
    %v677 = vpop.permute.xlu0 %676
    %v681 = vsel %vm498, %v581, 0
    %v684 = vsel %vm498, %v582, 0
    %686 = vmatprep.subr.mxu0 0.0
    %687 = vmatpush1.msra.mxu0 %v675
    %688 = vmatprep.subr.mxu0 0.0
    %689 = vmatpush1.msra.mxu0 %v677
    %690 = vmatprep.subr.mxu0 0.0
    %691 = vmatpush1.msra.mxu0 0.0
    %692 = vmatprep.subr.mxu0 0.0
    %693 = vmatpush1.msra.mxu0 0.0
    %694 = vmatprep.subr.mxu0 0.0
    %695 = vmatpush1.msra.mxu0 0.0
    %696 = vmatprep.subr.mxu0 0.0
    %697 = vmatpush1.msra.mxu0 0.0
    %698 = vmatprep.subr.mxu0 0.0
    %699 = vmatpush1.msra.mxu0 0.0
    %700 = vmatprep.subr.mxu0 0.0
    %701 = vmatpush1.msra.mxu0 0.0
    %702 = vmatprep.subr.mxu0 0.0
    %703 = vmatpush1.msra.mxu0 0.0
    %704 = vmatprep.subr.mxu0 0.0
    %705 = vmatpush1.msra.mxu0 0.0
    %706 = vmatprep.subr.mxu0 0.0
    %707 = vmatpush1.msra.mxu0 0.0
    %708 = vmatprep.subr.mxu0 0.0
    %709 = vmatpush1.msra.mxu0 0.0
    %710 = vmatprep.subr.mxu0 0.0
    %711 = vmatpush1.msra.mxu0 0.0
    %712 = vmatprep.subr.mxu0 0.0
    %713 = vmatpush1.msra.mxu0 0.0
    %714 = vmatprep.subr.mxu0 0.0
    %715 = vmatpush1.msra.mxu0 0.0
    %716 = vmatprep.subr.mxu0 0.0
    %717 = vmatpush1.msra.mxu0 0.0
    %718 = vmatprep.subr.mxu0 0.0
    %719 = vmatpush1.msra.mxu0 0.0
    %720 = vmatprep.subr.mxu0 0.0
    %721 = vmatpush1.msra.mxu0 0.0
    %722 = vmatprep.subr.mxu0 0.0
    %723 = vmatpush1.msra.mxu0 0.0
    %724 = vmatprep.subr.mxu0 0.0
    %725 = vmatpush1.msra.mxu0 0.0
    %726 = vmatprep.subr.mxu0 0.0
    %727 = vmatpush1.msra.mxu0 0.0
    %728 = vmatprep.subr.mxu0 0.0
    %729 = vmatpush1.msra.mxu0 0.0
    %730 = vmatprep.subr.mxu0 0.0
    %731 = vmatpush1.msra.mxu0 0.0
    %732 = vmatprep.subr.mxu0 0.0
    %733 = vmatpush1.msra.mxu0 0.0
    %734 = vmatprep.subr.mxu0 0.0
    %735 = vmatpush1.msra.mxu0 0.0
    %736 = vmatprep.subr.mxu0 0.0
    %737 = vmatpush1.msra.mxu0 0.0
    %738 = vmatprep.subr.mxu0 0.0
    %739 = vmatpush1.msra.mxu0 0.0
    %740 = vmatprep.subr.mxu0 0.0
    %741 = vmatpush1.msra.mxu0 0.0
    %742 = vmatprep.subr.mxu0 0.0
    %743 = vmatpush1.msra.mxu0 0.0
    %744 = vmatprep.subr.mxu0 0.0
    %745 = vmatpush1.msra.mxu0 0.0
    %746 = vmatprep.subr.mxu0 0.0
    %747 = vmatpush1.msra.mxu0 0.0
    %748 = vmatprep.subr.mxu0 0.0
    %749 = vmatpush1.msra.mxu0 0.0
    %750 = vmatprep.mubr.f32.mxu0 0.0
    %751 = vmatmul.mubr.f32.gmra.mrb[0].mxu0 %v681
    %v752 = vpop.f32.mrb[0].mxu0
    %v753 = vadd.f32 0.0, %v752
    %v754 = vpop.f32.mrb[0].mxu0
    %755 = vmatprep.mubr.f32.mxu0 0.0
    %756 = vmatmul.mubr.f32.gmra.mrb[0].mxu0 %v684
    %v757 = vpop.f32.mrb[0].mxu0
    %v758 = vadd.f32 0.0, %v757
    %v759 = vpop.f32.mrb[0].mxu0
    %760 = vdwg.mxu0
    %761 = vrot.lane.b32.xlu0 %v142, 64
    %v762 = vpop.permute.xlu0 %761
    %763 = vrot.lane.b32.xlu0 %v144, 64
    %v764 = vpop.permute.xlu0 %763
    %v768 = vsel %vm498, %v583, 0
    %v771 = vsel %vm498, %v584, 0
    %773 = vmatprep.subr.mxu0 0.0
    %774 = vmatpush1.msra.mxu0 %v762
    %775 = vmatprep.subr.mxu0 0.0
    %776 = vmatpush1.msra.mxu0 %v764
    %777 = vmatprep.subr.mxu0 0.0
    %778 = vmatpush1.msra.mxu0 0.0
    %779 = vmatprep.subr.mxu0 0.0
    %780 = vmatpush1.msra.mxu0 0.0
    %781 = vmatprep.subr.mxu0 0.0
    %782 = vmatpush1.msra.mxu0 0.0
    %783 = vmatprep.subr.mxu0 0.0
    %784 = vmatpush1.msra.mxu0 0.0
    %785 = vmatprep.subr.mxu0 0.0
    %786 = vmatpush1.msra.mxu0 0.0
    %787 = vmatprep.subr.mxu0 0.0
    %788 = vmatpush1.msra.mxu0 0.0
    %789 = vmatprep.subr.mxu0 0.0
    %790 = vmatpush1.msra.mxu0 0.0
    %791 = vmatprep.subr.mxu0 0.0
    %792 = vmatpush1.msra.mxu0 0.0
    %793 = vmatprep.subr.mxu0 0.0
    %794 = vmatpush1.msra.mxu0 0.0
    %795 = vmatprep.subr.mxu0 0.0
    %796 = vmatpush1.msra.mxu0 0.0
    %797 = vmatprep.subr.mxu0 0.0
    %798 = vmatpush1.msra.mxu0 0.0
    %799 = vmatprep.subr.mxu0 0.0
    %800 = vmatpush1.msra.mxu0 0.0
    %801 = vmatprep.subr.mxu0 0.0
    %802 = vmatpush1.msra.mxu0 0.0
    %803 = vmatprep.subr.mxu0 0.0
    %804 = vmatpush1.msra.mxu0 0.0
    %805 = vmatprep.subr.mxu0 0.0
    %806 = vmatpush1.msra.mxu0 0.0
    %807 = vmatprep.subr.mxu0 0.0
    %808 = vmatpush1.msra.mxu0 0.0
    %809 = vmatprep.subr.mxu0 0.0
    %810 = vmatpush1.msra.mxu0 0.0
    %811 = vmatprep.subr.mxu0 0.0
    %812 = vmatpush1.msra.mxu0 0.0
    %813 = vmatprep.subr.mxu0 0.0
    %814 = vmatpush1.msra.mxu0 0.0
    %815 = vmatprep.subr.mxu0 0.0
    %816 = vmatpush1.msra.mxu0 0.0
    %817 = vmatprep.subr.mxu0 0.0
    %818 = vmatpush1.msra.mxu0 0.0
    %819 = vmatprep.subr.mxu0 0.0
    %820 = vmatpush1.msra.mxu0 0.0
    %821 = vmatprep.subr.mxu0 0.0
    %822 = vmatpush1.msra.mxu0 0.0
    %823 = vmatprep.subr.mxu0 0.0
    %824 = vmatpush1.msra.mxu0 0.0
    %825 = vmatprep.subr.mxu0 0.0
    %826 = vmatpush1.msra.mxu0 0.0
    %827 = vmatprep.subr.mxu0 0.0
    %828 = vmatpush1.msra.mxu0 0.0
    %829 = vmatprep.subr.mxu0 0.0
    %830 = vmatpush1.msra.mxu0 0.0
    %831 = vmatprep.subr.mxu0 0.0
    %832 = vmatpush1.msra.mxu0 0.0
    %833 = vmatprep.subr.mxu0 0.0
    %834 = vmatpush1.msra.mxu0 0.0
    %835 = vmatprep.subr.mxu0 0.0
    %836 = vmatpush1.msra.mxu0 0.0
    %837 = vmatprep.mubr.f32.mxu0 0.0
    %838 = vmatmul.mubr.f32.gmra.mrb[0].mxu0 %v768
    %v839 = vpop.f32.mrb[0].mxu0
    %v840 = vadd.f32 0.0, %v839
    %v841 = vpop.f32.mrb[0].mxu0
    %842 = vmatprep.mubr.f32.mxu0 0.0
    %843 = vmatmul.mubr.f32.gmra.mrb[0].mxu0 %v771
    %v844 = vpop.f32.mrb[0].mxu0
    %v845 = vadd.f32 0.0, %v844
    %v846 = vpop.f32.mrb[0].mxu0
    %847 = vdwg.mxu0
    %848 = vrot.lane.b32.xlu0 %v146, 64
    %v849 = vpop.permute.xlu0 %848
    %850 = vrot.lane.b32.xlu0 %v148, 64
    %v851 = vpop.permute.xlu0 %850
    %v855 = vsel %vm498, %v585, 0
    %v858 = vsel %vm498, %v586, 0
    %860 = vmatprep.subr.mxu0 0.0
    %861 = vmatpush1.msra.mxu0 %v849
    %862 = vmatprep.subr.mxu0 0.0
    %863 = vmatpush1.msra.mxu0 %v851
    %864 = vmatprep.subr.mxu0 0.0
    %865 = vmatpush1.msra.mxu0 0.0
    %866 = vmatprep.subr.mxu0 0.0
    %867 = vmatpush1.msra.mxu0 0.0
    %868 = vmatprep.subr.mxu0 0.0
    %869 = vmatpush1.msra.mxu0 0.0
    %870 = vmatprep.subr.mxu0 0.0
    %871 = vmatpush1.msra.mxu0 0.0
    %872 = vmatprep.subr.mxu0 0.0
    %873 = vmatpush1.msra.mxu0 0.0
    %874 = vmatprep.subr.mxu0 0.0
    %875 = vmatpush1.msra.mxu0 0.0
    %876 = vmatprep.subr.mxu0 0.0
    %877 = vmatpush1.msra.mxu0 0.0
    %878 = vmatprep.subr.mxu0 0.0
    %879 = vmatpush1.msra.mxu0 0.0
    %880 = vmatprep.subr.mxu0 0.0
    %881 = vmatpush1.msra.mxu0 0.0
    %882 = vmatprep.subr.mxu0 0.0
    %883 = vmatpush1.msra.mxu0 0.0
    %884 = vmatprep.subr.mxu0 0.0
    %885 = vmatpush1.msra.mxu0 0.0
    %886 = vmatprep.subr.mxu0 0.0
    %887 = vmatpush1.msra.mxu0 0.0
    %888 = vmatprep.subr.mxu0 0.0
    %889 = vmatpush1.msra.mxu0 0.0
    %890 = vmatprep.subr.mxu0 0.0
    %891 = vmatpush1.msra.mxu0 0.0
    %892 = vmatprep.subr.mxu0 0.0
    %893 = vmatpush1.msra.mxu0 0.0
    %894 = vmatprep.subr.mxu0 0.0
    %895 = vmatpush1.msra.mxu0 0.0
    %896 = vmatprep.subr.mxu0 0.0
    %897 = vmatpush1.msra.mxu0 0.0
    %898 = vmatprep.subr.mxu0 0.0
    %899 = vmatpush1.msra.mxu0 0.0
    %900 = vmatprep.subr.mxu0 0.0
    %901 = vmatpush1.msra.mxu0 0.0
    %902 = vmatprep.subr.mxu0 0.0
    %903 = vmatpush1.msra.mxu0 0.0
    %904 = vmatprep.subr.mxu0 0.0
    %905 = vmatpush1.msra.mxu0 0.0
    %906 = vmatprep.subr.mxu0 0.0
    %907 = vmatpush1.msra.mxu0 0.0
    %908 = vmatprep.subr.mxu0 0.0
    %909 = vmatpush1.msra.mxu0 0.0
    %910 = vmatprep.subr.mxu0 0.0
    %911 = vmatpush1.msra.mxu0 0.0
    %912 = vmatprep.subr.mxu0 0.0
    %913 = vmatpush1.msra.mxu0 0.0
    %914 = vmatprep.subr.mxu0 0.0
    %915 = vmatpush1.msra.mxu0 0.0
    %916 = vmatprep.subr.mxu0 0.0
    %917 = vmatpush1.msra.mxu0 0.0
    %918 = vmatprep.subr.mxu0 0.0
    %919 = vmatpush1.msra.mxu0 0.0
    %920 = vmatprep.subr.mxu0 0.0
    %921 = vmatpush1.msra.mxu0 0.0
    %922 = vmatprep.subr.mxu0 0.0
    %923 = vmatpush1.msra.mxu0 0.0
    %924 = vmatprep.mubr.f32.mxu0 0.0
    %925 = vmatmul.mubr.f32.gmra.mrb[0].mxu0 %v855
    %v926 = vpop.f32.mrb[0].mxu0
    %v927 = vadd.f32 0.0, %v926
    %v928 = vpop.f32.mrb[0].mxu0
    %929 = vmatprep.mubr.f32.mxu0 0.0
    %930 = vmatmul.mubr.f32.gmra.mrb[0].mxu0 %v858
    %v931 = vpop.f32.mrb[0].mxu0
    %v932 = vadd.f32 0.0, %v931
    %v933 = vpop.f32.mrb[0].mxu0
    %934 = vdwg.mxu0
    %937 = vrot.lane.b32.xlu0 %v753, 8
    %v938 = vpop.permute.xlu0 %937
    %939 = vrot.lane.b32.xlu0 %v758, 8
    %v940 = vpop.permute.xlu0 %939
    %945 = vrot.lane.b32.xlu0 %v840, 16
    %v946 = vpop.permute.xlu0 %945
    %947 = vrot.lane.b32.xlu0 %v845, 16
    %v948 = vpop.permute.xlu0 %947
    %953 = vrot.lane.b32.xlu0 %v927, 24
    %v954 = vpop.permute.xlu0 %953
    %955 = vrot.lane.b32.xlu0 %v932, 24
    %v956 = vpop.permute.xlu0 %955
    %v959 = vsel %vm153, %v666, %v938
    %v960 = vsel %vm153, %v671, %v940
    %v961 = vsel %vm498, %v959, %v946
    %v962 = vsel %vm498, %v960, %v948
    %vm963 = vcmask 195584
    %v964 = vsel %vm963, %v961, %v954
    %v965 = vsel %vm963, %v962, %v956
    %970 = vrot.lane.b32.xlu0 %v40, 32
    %v971 = vpop.permute.xlu0 %970
    %972 = vrot.lane.b32.xlu0 %v41, 32
    %v973 = vpop.permute.xlu0 %972
    %974 = vrot.lane.b32.xlu0 %v42, 32
    %v975 = vpop.permute.xlu0 %974
    %976 = vrot.lane.b32.xlu0 %v43, 32
    %v977 = vpop.permute.xlu0 %976
    %983 = vrot.lane.b32.xlu0 %v52, 32
    %v984 = vpop.permute.xlu0 %983
    %v987 = vsel %vm53, %v964, 0
    %v990 = vsel %vm53, %v965, 0
    %992 = vmatprep.subr.mxu0 0.0
    %993 = vmatpush1.msra.mxu0 %v971
    %994 = vmatprep.subr.mxu0 0.0
    %995 = vmatpush1.msra.mxu0 %v973
    %996 = vmatprep.subr.mxu0 0.0
    %997 = vmatpush1.msra.mxu0 %v975
    %998 = vmatprep.subr.mxu0 0.0
    %999 = vmatpush1.msra.mxu0 %v977
    %1000 = vmatprep.subr.mxu0 0.0
    %1001 = vmatpush1.msra.mxu0 0.0
    %1002 = vmatprep.subr.mxu0 0.0
    %1003 = vmatpush1.msra.mxu0 0.0
    %1004 = vmatprep.subr.mxu0 0.0
    %1005 = vmatpush1.msra.mxu0 0.0
    %1006 = vmatprep.subr.mxu0 0.0
    %1007 = vmatpush1.msra.mxu0 0.0
    %1008 = vmatprep.subr.mxu0 0.0
    %1009 = vmatpush1.msra.mxu0 0.0
    %1010 = vmatprep.subr.mxu0 0.0
    %1011 = vmatpush1.msra.mxu0 0.0
    %1012 = vmatprep.subr.mxu0 0.0
    %1013 = vmatpush1.msra.mxu0 0.0
    %1014 = vmatprep.subr.mxu0 0.0
    %1015 = vmatpush1.msra.mxu0 0.0
    %1016 = vmatprep.subr.mxu0 0.0
    %1017 = vmatpush1.msra.mxu0 0.0
    %1018 = vmatprep.subr.mxu0 0.0
    %1019 = vmatpush1.msra.mxu0 0.0
    %1020 = vmatprep.subr.mxu0 0.0
    %1021 = vmatpush1.msra.mxu0 0.0
    %1022 = vmatprep.subr.mxu0 0.0
    %1023 = vmatpush1.msra.mxu0 0.0
    %1024 = vmatprep.subr.mxu0 0.0
    %1025 = vmatpush1.msra.mxu0 0.0
    %1026 = vmatprep.subr.mxu0 0.0
    %1027 = vmatpush1.msra.mxu0 0.0
    %1028 = vmatprep.subr.mxu0 0.0
    %1029 = vmatpush1.msra.mxu0 0.0
    %1030 = vmatprep.subr.mxu0 0.0
    %1031 = vmatpush1.msra.mxu0 0.0
    %1032 = vmatprep.subr.mxu0 0.0
    %1033 = vmatpush1.msra.mxu0 0.0
    %1034 = vmatprep.subr.mxu0 0.0
    %1035 = vmatpush1.msra.mxu0 0.0
    %1036 = vmatprep.subr.mxu0 0.0
    %1037 = vmatpush1.msra.mxu0 0.0
    %1038 = vmatprep.subr.mxu0 0.0
    %1039 = vmatpush1.msra.mxu0 0.0
    %1040 = vmatprep.subr.mxu0 0.0
    %1041 = vmatpush1.msra.mxu0 0.0
    %1042 = vmatprep.subr.mxu0 0.0
    %1043 = vmatpush1.msra.mxu0 0.0
    %1044 = vmatprep.subr.mxu0 0.0
    %1045 = vmatpush1.msra.mxu0 0.0
    %1046 = vmatprep.subr.mxu0 0.0
    %1047 = vmatpush1.msra.mxu0 0.0
    %1048 = vmatprep.subr.mxu0 0.0
    %1049 = vmatpush1.msra.mxu0 0.0
    %1050 = vmatprep.subr.mxu0 0.0
    %1051 = vmatpush1.msra.mxu0 0.0
    %1052 = vmatprep.subr.mxu0 0.0
    %1053 = vmatpush1.msra.mxu0 0.0
    %1054 = vmatprep.subr.mxu0 0.0
    %1055 = vmatpush1.msra.mxu0 0.0
    %1056 = vmatprep.mubr.f32.mxu0 0.0
    %1057 = vmatmul.mubr.f32.gmra.mrb[0].mxu0 %v987
    %v1058 = vpop.f32.mrb[0].mxu0
    %v1059 = vadd.f32 %v984, %v1058
    %v1060 = vpop.f32.mrb[0].mxu0
    %1061 = vmatprep.mubr.f32.mxu0 0.0
    %1062 = vmatmul.mubr.f32.gmra.mrb[0].mxu0 %v990
    %v1063 = vpop.f32.mrb[0].mxu0
    %v1064 = vadd.f32 %v984, %v1063
    %v1065 = vpop.f32.mrb[0].mxu0
    %1066 = vdwg.mxu0
    %1067 = vst.msk [vmem:[#allocation7] sm:$0xff] %vm53, %v1059
    %1068 = vst.msk [vmem:[#allocation7 + $0x8] sm:$0xff] %vm53, %v1064
    // Predicated region
    $region18: #{tpu_custom_call.1} parent=1 // pred_check
      _
    $region19: #{tpu_custom_call.1} parent=1 // pred_check_branch
      %1070 = sbr.rel (0) target = $region21
    $region20: #{tpu_custom_call.1} parent=1 // pred_region
      %s1072 = ssub.s32 256, 256
      %1073 = vsyncadd [#allocation4], %s1072
      %s1074 = sshll.u32 [#allocation7], 4
      %s1075 = int_to_ptr.vmem [resolvable:$true] %s1074
      %1080 = dma.vmem_to_hbm [thread:$0]  %s1075, 256, %s2, [#allocation4], 128, 128, 8
    $region21: #{tpu_custom_call.1} parent=1 // pred_fallthru
      _
    // Predicated region
    $region22: #{tpu_custom_call.1} parent=1 // pred_check
      _
    $region23: #{tpu_custom_call.1} parent=1 // pred_check_branch
      %1082 = sbr.rel (0) target = $region25
    $region24: #{tpu_custom_call.1} parent=1 // pred_region
      %1083 = dma.done [#allocation4], 256
    $region25: #{tpu_custom_call.1} parent=1 // pred_fallthru
      _
    %1084 = vsyncpa [#allocation3], 1
    %1085 = vsyncpa [#allocation6], 1
    %1086 = vsyncpa [#allocation4], 1

</llo_original>
